<compile_context>
chip_gen: v6e
topology: v6e:2x2x1
jax: 0.10.0
libtpu: 0.0.40
codegen_flags: <defaults>
</compile_context>

<pallas_src>
import math

import jax
import jax.numpy as jnp
from jax.experimental import pallas as pl
from jax.experimental.pallas import tpu as pltpu


def _round_up(x: int, m: int) -> int:
    return (x + m - 1) // m * m


def _round_down(x: int, m: int) -> int:
    return x // m * m


def _abs_pos_emb_kernel(x_ref, w_ref, o_ref):
    # x_ref: (tr, K)  channels-last coords, row-major grouped (K = g*emb_dim, tiny)
    # w_ref: (K, L)   block-diagonal grouped weight (L = g*out_dim, lane-dense)
    # o_ref: (tr, L)
    x = x_ref[...].astype(jnp.float32)
    w = w_ref[...].astype(jnp.float32)
    k_dim = x.shape[1]  # static, <= 16
    # K is tiny: unroll as VPU broadcast-multiplies; (tr,1)*(1,L) -> (tr,L).
    acc = x[:, 0:1] * w[0:1, :]
    for c in range(1, k_dim):
        acc = acc + x[:, c:c + 1] * w[c:c + 1, :]
    o_ref[...] = acc.astype(o_ref.dtype)


def absolute_positional_embedding(coords, weight_t, *,
                                  target_block_bytes=3 * 1024 * 1024):
    """coords: (B, emb_dim, H, W), weight_t: (emb_dim, out_dim) == W_lin.T
    -> (B, H, W, out_dim)."""
    B, C, H, W = coords.shape
    emb_dim, out_dim = weight_t.shape
    assert C == emb_dim, f"coords channels {C} != linear in_features {emb_dim}"
    M = B * H * W
    itemsize = jnp.dtype(coords.dtype).itemsize

    # --- lane-dense grouping: present (M, out_dim) as (M/g, g*out_dim) with the
    # last dim a multiple of 128 (free row-major reinterpretation).
    if out_dim % 128 == 0:
        g = 1
    else:
        g = 128 // math.gcd(out_dim, 128)
        if g > 8 or (M % g) != 0:
            g = 1  # fall back to plain layout (masked stores on the last lanes)
    L = g * out_dim
    K = g * emb_dim
    rows = M // g

    # Block-diagonal grouped weight: W_big[j*emb+c, j*out+k] = weight_t[c, k].
    if g == 1:
        w_big = weight_t
    else:
        w_big = jnp.zeros((K, L), dtype=weight_t.dtype)
        for j in range(g):
            w_big = w_big.at[j * emb_dim:(j + 1) * emb_dim,
                             j * out_dim:(j + 1) * out_dim].set(weight_t)

    # 'B C H W -> B H W C', then free row-major regroup to (rows, K).
    # (Input is emb_dim/out_dim smaller than the output; this XLA transpose is
    #  negligible HBM traffic vs. the output write.)
    x_grouped = jnp.transpose(coords, (0, 2, 3, 1)).reshape(rows, K)

    # --- tile sizing: ~3 MiB output blocks; keep >= 2 grid steps (v7x megacore).
    if rows <= 8:
        tr = rows
    else:
        tr = max(8, _round_down(target_block_bytes // (itemsize * L), 8))
        tr = min(tr, _round_up(pl.cdiv(rows, 2), 8))
    grid = pl.cdiv(rows, tr)

    cost = pl.CostEstimate(
        flops=2 * M * emb_dim * out_dim,
        transcendentals=0,
        bytes_accessed=(M * emb_dim + M * out_dim) * itemsize
        + K * L * jnp.dtype(weight_t.dtype).itemsize,
    )

    out_grouped = pl.pallas_call(
        _abs_pos_emb_kernel,
        out_shape=jax.ShapeDtypeStruct((rows, L), coords.dtype),
        grid_spec=pltpu.PrefetchScalarGridSpec(
            num_scalar_prefetch=0,
            grid=(grid,),
            in_specs=[
                pl.BlockSpec((tr, K), lambda i: (i, 0)),
                pl.BlockSpec((K, L), lambda i: (0, 0)),
            ],
            out_specs=pl.BlockSpec((tr, L), lambda i: (i, 0)),
        ),
        compiler_params=pltpu.CompilerParams(
            dimension_semantics=("parallel",),
            # Double-buffered working set stays <= ~13 MiB with these tiles;
            # 48 MiB keeps headroom while staying inside v7x's 64 MiB VMEM.
            vmem_limit_bytes=48 * 1024 * 1024,
        ),
        cost_estimate=cost,
    )(x_grouped, w_big)

    # (rows, g*out_dim) row-major == (M, out_dim) row-major: reshape is free.
    return out_grouped.reshape(B, H, W, out_dim)


def _reference(coords, weight_t):
    h = jnp.transpose(coords, (0, 2, 3, 1))          # B H W C
    return jnp.einsum("bhwc,cn->bhwn", h, weight_t)  # linear, no bias


def _check(key, B, H, W, emb_dim, out_dim):
    k_c, k_w = jax.random.split(key, 2)
    coords = jax.random.normal(k_c, (B, emb_dim, H, W), dtype=jnp.float32)
    # nn.Linear(emb_dim, out_dim, bias=False): weight is (out_dim, emb_dim);
    # pass its transpose so the kernel computes h @ W.T directly.
    weight_t = jax.random.normal(k_w, (emb_dim, out_dim), dtype=jnp.float32) * 0.1
    out = jax.block_until_ready(absolute_positional_embedding(coords, weight_t))
    ref = _reference(coords, weight_t)
    assert out.shape == (B, H, W, out_dim)
    assert jnp.allclose(out, ref, atol=1e-5, rtol=1e-5)


if __name__ == "__main__":
    key = jax.random.PRNGKey(0)
    k1, k2, k3 = jax.random.split(key, 3)

    # polar_coordinates path: emb_dim = 2 channels of per-pixel coordinates.
    _check(k1, B=2, H=16, W=32, emb_dim=2, out_dim=64)   # g=2 lane-dense path
    _check(k2, B=2, H=8, W=8, emb_dim=2, out_dim=128)    # g=1 (already lane-dense)
    _check(k3, B=1, H=8, W=10, emb_dim=2, out_dim=64)    # ragged final block

    print("KERNEL_OK")
</pallas_src>

<mosaic_0001>
module attributes {stable_mosaic.version = 11 : i64} {
  func.func @_abs_pos_emb_kernel(%arg0: i32, %arg1: memref<256x4xf32, #tpu.memory_space<vmem>>, %arg2: memref<4x128xf32, #tpu.memory_space<vmem>>, %arg3: memref<256x128xf32, #tpu.memory_space<vmem>>) attributes {dimension_semantics = [#tpu.dimension_semantics<parallel>], iteration_bounds = array<i64: 2>, scalar_prefetch = 0 : i64, scratch_operands = 0 : i64, tpu.core_type = #tpu.core_type<tc>, window_params = [{transform_indices = @transform_0, window_bounds = array<i64: 256, 4>}, {pipeline_mode = #tpu.pipeline_mode<synchronous>, transform_indices = @transform_1, window_bounds = array<i64: 4, 128>}, {transform_indices = @transform_2, window_bounds = array<i64: 256, 128>}]} {
    %c0 = arith.constant 0 : index
    %c0_0 = arith.constant 0 : index
    %0 = vector.load %arg1[%c0, %c0_0] : memref<256x4xf32, #tpu.memory_space<vmem>>, vector<256x4xf32>
    %c0_1 = arith.constant 0 : index
    %c0_2 = arith.constant 0 : index
    %1 = vector.load %arg2[%c0_1, %c0_2] : memref<4x128xf32, #tpu.memory_space<vmem>>, vector<4x128xf32>
    %2 = vector.extract_strided_slice %0 {offsets = [0, 0], sizes = [256, 1], strides = [1, 1]} : vector<256x4xf32> to vector<256x1xf32>
    %3 = vector.extract_strided_slice %1 {offsets = [0, 0], sizes = [1, 128], strides = [1, 1]} : vector<4x128xf32> to vector<1x128xf32>
    %4 = vector.broadcast %2 : vector<256x1xf32> to vector<256x128xf32>
    %5 = vector.broadcast %3 : vector<1x128xf32> to vector<256x128xf32>
    %6 = arith.mulf %4, %5 : vector<256x128xf32>
    %7 = vector.extract_strided_slice %0 {offsets = [0, 1], sizes = [256, 1], strides = [1, 1]} : vector<256x4xf32> to vector<256x1xf32>
    %8 = vector.extract_strided_slice %1 {offsets = [1, 0], sizes = [1, 128], strides = [1, 1]} : vector<4x128xf32> to vector<1x128xf32>
    %9 = vector.broadcast %7 : vector<256x1xf32> to vector<256x128xf32>
    %10 = vector.broadcast %8 : vector<1x128xf32> to vector<256x128xf32>
    %11 = arith.mulf %9, %10 : vector<256x128xf32>
    %12 = arith.addf %6, %11 : vector<256x128xf32>
    %13 = vector.extract_strided_slice %0 {offsets = [0, 2], sizes = [256, 1], strides = [1, 1]} : vector<256x4xf32> to vector<256x1xf32>
    %14 = vector.extract_strided_slice %1 {offsets = [2, 0], sizes = [1, 128], strides = [1, 1]} : vector<4x128xf32> to vector<1x128xf32>
    %15 = vector.broadcast %13 : vector<256x1xf32> to vector<256x128xf32>
    %16 = vector.broadcast %14 : vector<1x128xf32> to vector<256x128xf32>
    %17 = arith.mulf %15, %16 : vector<256x128xf32>
    %18 = arith.addf %12, %17 : vector<256x128xf32>
    %19 = vector.extract_strided_slice %0 {offsets = [0, 3], sizes = [256, 1], strides = [1, 1]} : vector<256x4xf32> to vector<256x1xf32>
    %20 = vector.extract_strided_slice %1 {offsets = [3, 0], sizes = [1, 128], strides = [1, 1]} : vector<4x128xf32> to vector<1x128xf32>
    %21 = vector.broadcast %19 : vector<256x1xf32> to vector<256x128xf32>
    %22 = vector.broadcast %20 : vector<1x128xf32> to vector<256x128xf32>
    %23 = arith.mulf %21, %22 : vector<256x128xf32>
    %24 = arith.addf %18, %23 : vector<256x128xf32>
    %c0_3 = arith.constant 0 : index
    %c0_4 = arith.constant 0 : index
    %25 = vector.load %arg3[%c0_3, %c0_4] : memref<256x128xf32, #tpu.memory_space<vmem>>, vector<256x128xf32>
    tpu.vector_store %arg3[%c0_3, %c0_4], %24 {strides = array<i32>} : memref<256x128xf32, #tpu.memory_space<vmem>>, vector<256x128xf32>,
    return
  }
  func.func @transform_0(%arg0: i32) -> (i32, i32) {
    %c0_i32 = arith.constant 0 : i32
    %c0_i32_0 = arith.constant 0 : i32
    return %arg0, %c0_i32 : i32, i32
  }
  func.func @transform_1(%arg0: i32) -> (i32, i32) {
    %c0_i32 = arith.constant 0 : i32
    %c0_i32_0 = arith.constant 0 : i32
    %c0_i32_1 = arith.constant 0 : i32
    return %c0_i32, %c0_i32_0 : i32, i32
  }
  func.func @transform_2(%arg0: i32) -> (i32, i32) {
    %c0_i32 = arith.constant 0 : i32
    %c0_i32_0 = arith.constant 0 : i32
    return %arg0, %c0_i32 : i32, i32
  }
}

</mosaic_0001>

<llo_original>
// kernel: tpu_custom_call.1
$region0: #{tpu_custom_call.1}
  #allocation0 [shape = 'u32[]', space=smem, size = 0x4, offset = 0x4, fixed_abs, tag = 'smem constant byte address 0x4 - core index']
  #allocation1 [shape = 'u32[144,128]{1,0:T(1,128)}', space=vmem, size = 0x12000, scoped, tag = 'internal scratch']
  %s0 = inlined_call_operand.vmem [shape: f32[512,4], index: 0, kind: input, shape index: {}]
  %s1 = inlined_call_operand.vmem [shape: f32[4,128], index: 1, kind: input, shape index: {}]
  %s2 = inlined_call_operand.hbm [shape: f32[512,128], index: 2, kind: output, shape index: {}]
  %s3 = sld [smem:[#allocation0]]
  $region41: #{tpu_custom_call.1} parent=0
    _
  %s5 = ssub.s32 1, %s3
  %s6 = scalar_select 0, %s5, %s3
  $region1: #{tpu_custom_call.1} parent=0
    #allocation2 [shape = 'u8[262144]{0}', space=vmem, size = 0x40000, scoped, tag = 'output window, operand 0']
    #allocation3 [shape = 's32[2]{0}', space=sflag, size = 0x8, scoped, tag = 'scoped memory for tpu_custom_call.1']
    %7 = vsyncpa [#allocation3], 0
    %s8 = scalar_lea.sflag [#allocation3], 1
    %9 = vsyncpa %s8, 0
    loop: start=0, step=1, limit=4
    $region2: #{tpu_custom_call.1} parent=1 // loop_pre_header
      _
    $region3: #{tpu_custom_call.1} parent=1 // loop_header
      %s11 = sphi 0, %s15
      %p12 = scmp.ge.s32.totalorder %s11, 4
      %s21 = sphi 0, %s23
      %s24 = sphi 0, %s21
      %s25 = sphi 0, %s24
      %s41 = sphi 0, %s25
      %s45 = sphi 0, %s45
      %s47 = sphi 0, %s45
      %s48 = sphi 0, %s47
      %s62 = sphi 0, %s48
      %s68 = sphi 0, %s70
      %s71 = sphi 0, %s68
      %s72 = sphi 0, %s71
      %s88 = sphi 0, %s72
    $region4: #{tpu_custom_call.1} parent=1 // loop_header_branch
      %14 = sbr.rel (%p12) target = $region8
    $region5: #{tpu_custom_call.1} parent=1 // loop_body
      %s16 = ssub.s32 %s11, 1
      %s17 = ssub.s32 %s11, 2
      %s18 = sadd.s32 %s11, 1
      %s19 = ssub.s32 %s11, %s18
      %p20 = scmp.eq.s32.totalorder %s19, 0
      %s22 = sadd.s32 %s21, 1
      %s23 = scalar_select %p20, %s21, %s22
      %p26 = pneg %p20
      %p27 = scmp.eq.s32.totalorder %s11, 1
      %p28 = por %p26, %p27
      %p29 = scmp.ne.s32.totalorder %s21, %s24
      %p30 = scmp.eq.s32.totalorder %s11, 0
      %p31 = por %p29, %p30
      %p32 = scmp.ne.s32.totalorder %s21, %s24
      %p33 = scmp.eq.s32.totalorder %s16, 1
      %p34 = por %p32, %p33
      %p35 = scmp.ne.s32.totalorder %s24, %s25
      %p36 = scmp.eq.s32.totalorder %s16, 0
      %p37 = por %p35, %p36
      %p38 = scmp.ne.s32.totalorder %s24, %s25
      %p39 = scmp.eq.s32.totalorder %s17, 1
      %p40 = por %p38, %p39
      %p42 = scmp.ne.s32.totalorder %s25, %s41
      %p43 = scmp.eq.s32.totalorder %s17, 0
      %p44 = por %p42, %p43
      %s46 = sadd.s32 %s45, 1
      %p49 = scmp.eq.s32.totalorder %s11, 1
      %p50 = scmp.ne.s32.totalorder %s45, %s47
      %p51 = scmp.eq.s32.totalorder %s11, 0
      %p52 = por %p50, %p51
      %p53 = scmp.ne.s32.totalorder %s45, %s47
      %p54 = scmp.eq.s32.totalorder %s16, 1
      %p55 = por %p53, %p54
      %p56 = scmp.ne.s32.totalorder %s47, %s48
      %p57 = scmp.eq.s32.totalorder %s16, 0
      %p58 = por %p56, %p57
      %p59 = scmp.ne.s32.totalorder %s47, %s48
      %p60 = scmp.eq.s32.totalorder %s17, 1
      %p61 = por %p59, %p60
      %p63 = scmp.ne.s32.totalorder %s48, %s62
      %p64 = scmp.eq.s32.totalorder %s17, 0
      %p65 = por %p63, %p64
      %s66 = ssub.s32 %s11, %s18
      %p67 = scmp.eq.s32.totalorder %s66, 0
      %s69 = sadd.s32 %s68, 1
      %s70 = scalar_select %p67, %s68, %s69
      %p73 = pneg %p67
      %p74 = scmp.eq.s32.totalorder %s11, 1
      %p75 = por %p73, %p74
      %p76 = scmp.ne.s32.totalorder %s68, %s71
      %p77 = scmp.eq.s32.totalorder %s11, 0
      %p78 = por %p76, %p77
      %p79 = scmp.ne.s32.totalorder %s68, %s71
      %p80 = scmp.eq.s32.totalorder %s16, 1
      %p81 = por %p79, %p80
      %p82 = scmp.ne.s32.totalorder %s71, %s72
      %p83 = scmp.eq.s32.totalorder %s16, 0
      %p84 = por %p82, %p83
      %p85 = scmp.ne.s32.totalorder %s71, %s72
      %p86 = scmp.eq.s32.totalorder %s17, 1
      %p87 = por %p85, %p86
      %p89 = scmp.ne.s32.totalorder %s72, %s88
      %p90 = scmp.eq.s32.totalorder %s17, 0
      %p91 = por %p89, %p90
      %p92 = scmp.le.s32.totalorder 1, %s11
      %p93 = scmp.lt.s32.totalorder %s11, 3
      %p94 = pnand %p92, %p93
      %p95 = pneg %p94
      // Predicated region
      $region9: #{tpu_custom_call.1} parent=5 // pred_check
        _
      $region10: #{tpu_custom_call.1} parent=5 // pred_check_branch
        %97 = sbr.rel (%p94) target = $region12
      $region11: #{tpu_custom_call.1} parent=5 // pred_region
        %s98 = ssub.s32 %s11, 1
        // Predicated region
        $region13: #{tpu_custom_call.1} parent=11 // pred_check
          %p99 = pneg %p58
        $region14: #{tpu_custom_call.1} parent=11 // pred_check_branch
          %101 = sbr.rel (%p99) target = $region16
        $region15: #{tpu_custom_call.1} parent=11 // pred_region
          _
        $region16: #{tpu_custom_call.1} parent=11 // pred_fallthru
          _
      $region12: #{tpu_custom_call.1} parent=5 // pred_fallthru
        _
      %p102 = scmp.lt.s32.totalorder %s11, 2
      // Predicated region
      $region17: #{tpu_custom_call.1} parent=5 // pred_check
        %p103 = pneg %p102
      $region18: #{tpu_custom_call.1} parent=5 // pred_check_branch
        %105 = sbr.rel (%p103) target = $region20
      $region19: #{tpu_custom_call.1} parent=5 // pred_region
        // Predicated region
        $region21: #{tpu_custom_call.1} parent=19 // pred_check
          %p106 = pneg %p31
        $region22: #{tpu_custom_call.1} parent=19 // pred_check_branch
          %108 = sbr.rel (%p106) target = $region24
        $region23: #{tpu_custom_call.1} parent=19 // pred_region
          %s109 = smul.u32 32, %s11
          %p110 = scmp.lt.s32.totalorder %s109, 63
          %s111 = scalar_select %p110, %s109, 63
          %s112 = smul.addr %s111, 8
          %s113 = scalar_lea.vmem %s0, %s112
          %s114 = smul.u32 32, %s11
        $region24: #{tpu_custom_call.1} parent=19 // pred_fallthru
          _
      $region20: #{tpu_custom_call.1} parent=5 // pred_fallthru
        _
      %p115 = scmp.le.s32.totalorder 1, %s11
      %p116 = scmp.lt.s32.totalorder %s11, 3
      %p117 = pnand %p115, %p116
      %p118 = pneg %p117
      // Predicated region
      $region25: #{tpu_custom_call.1} parent=5 // pred_check
        _
      $region26: #{tpu_custom_call.1} parent=5 // pred_check_branch
        %120 = sbr.rel (%p117) target = $region28
      $region27: #{tpu_custom_call.1} parent=5 // pred_region
        %s121 = ssub.s32 %s11, 1
        %s122 = smul.u32 32, %s16
        %p123 = scmp.lt.s32.totalorder %s122, 63
        %s124 = scalar_select %p123, %s122, 63
        %s125 = smul.addr %s124, 8
        %s126 = scalar_lea.vmem %s0, %s125
        %p127 = pneg %p37
        %p128 = pneg %p34
        %p129 = pneg %p58
        %p130 = pneg %p55
        %p131 = pneg %p84
        %p132 = pneg %p81
        %s133 = sand.u32 %s71, 1
        %s134 = scalar_lea.sflag [#allocation3], %s133
        %s135 = sand.u32 %s71, 1
        %s136 = smul.addr %s135, 256
        %s137 = scalar_lea.vmem [#allocation2], %s136
        %s138 = smul.u32 32, %s16
        %p139 = scmp.lt.s32.totalorder %s138, 63
        %s140 = scalar_select %p139, %s138, 63
        %s141 = smul.addr %s140, 8
        %s142 = scalar_lea.vmem %s0, %s141
        %s143 = smul.u32 32, %s16
        %s144 = smul.u32 32, %s16
        %v145 = vld [vmem:[%s142] sm:$0xff]
        %v146 = vld [vmem:[%s142 + $0x8] sm:$0xff]
        %v147 = vld [vmem:[%s142 + $0x10] sm:$0xff]
        %v148 = vld [vmem:[%s142 + $0x18] sm:$0xff]
        %v149 = vld [vmem:[%s142 + $0x20] sm:$0xff]
        %v150 = vld [vmem:[%s142 + $0x28] sm:$0xff]
        %v151 = vld [vmem:[%s142 + $0x30] sm:$0xff]
        %v152 = vld [vmem:[%s142 + $0x38] sm:$0xff]
        %v153 = vld [vmem:[%s142 + $0x40] sm:$0xff]
        %v154 = vld [vmem:[%s142 + $0x48] sm:$0xff]
        %v155 = vld [vmem:[%s142 + $0x50] sm:$0xff]
        %v156 = vld [vmem:[%s142 + $0x58] sm:$0xff]
        %v157 = vld [vmem:[%s142 + $0x60] sm:$0xff]
        %v158 = vld [vmem:[%s142 + $0x68] sm:$0xff]
        %v159 = vld [vmem:[%s142 + $0x70] sm:$0xff]
        %v160 = vld [vmem:[%s142 + $0x78] sm:$0xff]
        %v161 = vld [vmem:[%s142 + $0x80] sm:$0xff]
        %v162 = vld [vmem:[%s142 + $0x88] sm:$0xff]
        %v163 = vld [vmem:[%s142 + $0x90] sm:$0xff]
        %v164 = vld [vmem:[%s142 + $0x98] sm:$0xff]
        %v165 = vld [vmem:[%s142 + $0xa0] sm:$0xff]
        %v166 = vld [vmem:[%s142 + $0xa8] sm:$0xff]
        %v167 = vld [vmem:[%s142 + $0xb0] sm:$0xff]
        %v168 = vld [vmem:[%s142 + $0xb8] sm:$0xff]
        %v169 = vld [vmem:[%s142 + $0xc0] sm:$0xff]
        %v170 = vld [vmem:[%s142 + $0xc8] sm:$0xff]
        %v171 = vld [vmem:[%s142 + $0xd0] sm:$0xff]
        %v172 = vld [vmem:[%s142 + $0xd8] sm:$0xff]
        %v173 = vld [vmem:[%s142 + $0xe0] sm:$0xff]
        %v174 = vld [vmem:[%s142 + $0xe8] sm:$0xff]
        %v175 = vld [vmem:[%s142 + $0xf0] sm:$0xff]
        %v176 = vld [vmem:[%s142 + $0xf8] sm:$0xff]
        %v177 = vld [vmem:[%s1] sm:$0xf]
        %179 = vset.pattern.permute.xlu0 0
        %180 = vperm.xlu0 %179, %v145
        %v181 = vpop.permute.xlu0 %180
        %184 = vset.pattern.permute.xlu0 0
        %185 = vperm.xlu0 %184, %v146
        %v186 = vpop.permute.xlu0 %185
        %189 = vset.pattern.permute.xlu0 0
        %190 = vperm.xlu0 %189, %v147
        %v191 = vpop.permute.xlu0 %190
        %194 = vset.pattern.permute.xlu0 0
        %195 = vperm.xlu0 %194, %v148
        %v196 = vpop.permute.xlu0 %195
        %199 = vset.pattern.permute.xlu0 0
        %200 = vperm.xlu0 %199, %v149
        %v201 = vpop.permute.xlu0 %200
        %204 = vset.pattern.permute.xlu0 0
        %205 = vperm.xlu0 %204, %v150
        %v206 = vpop.permute.xlu0 %205
        %209 = vset.pattern.permute.xlu0 0
        %210 = vperm.xlu0 %209, %v151
        %v211 = vpop.permute.xlu0 %210
        %214 = vset.pattern.permute.xlu0 0
        %215 = vperm.xlu0 %214, %v152
        %v216 = vpop.permute.xlu0 %215
        %219 = vset.pattern.permute.xlu0 0
        %220 = vperm.xlu0 %219, %v153
        %v221 = vpop.permute.xlu0 %220
        %224 = vset.pattern.permute.xlu0 0
        %225 = vperm.xlu0 %224, %v154
        %v226 = vpop.permute.xlu0 %225
        %229 = vset.pattern.permute.xlu0 0
        %230 = vperm.xlu0 %229, %v155
        %v231 = vpop.permute.xlu0 %230
        %234 = vset.pattern.permute.xlu0 0
        %235 = vperm.xlu0 %234, %v156
        %v236 = vpop.permute.xlu0 %235
        %239 = vset.pattern.permute.xlu0 0
        %240 = vperm.xlu0 %239, %v157
        %v241 = vpop.permute.xlu0 %240
        %244 = vset.pattern.permute.xlu0 0
        %245 = vperm.xlu0 %244, %v158
        %v246 = vpop.permute.xlu0 %245
        %249 = vset.pattern.permute.xlu0 0
        %250 = vperm.xlu0 %249, %v159
        %v251 = vpop.permute.xlu0 %250
        %254 = vset.pattern.permute.xlu0 0
        %255 = vperm.xlu0 %254, %v160
        %v256 = vpop.permute.xlu0 %255
        %259 = vset.pattern.permute.xlu0 0
        %260 = vperm.xlu0 %259, %v161
        %v261 = vpop.permute.xlu0 %260
        %264 = vset.pattern.permute.xlu0 0
        %265 = vperm.xlu0 %264, %v162
        %v266 = vpop.permute.xlu0 %265
        %269 = vset.pattern.permute.xlu0 0
        %270 = vperm.xlu0 %269, %v163
        %v271 = vpop.permute.xlu0 %270
        %274 = vset.pattern.permute.xlu0 0
        %275 = vperm.xlu0 %274, %v164
        %v276 = vpop.permute.xlu0 %275
        %279 = vset.pattern.permute.xlu0 0
        %280 = vperm.xlu0 %279, %v165
        %v281 = vpop.permute.xlu0 %280
        %284 = vset.pattern.permute.xlu0 0
        %285 = vperm.xlu0 %284, %v166
        %v286 = vpop.permute.xlu0 %285
        %289 = vset.pattern.permute.xlu0 0
        %290 = vperm.xlu0 %289, %v167
        %v291 = vpop.permute.xlu0 %290
        %294 = vset.pattern.permute.xlu0 0
        %295 = vperm.xlu0 %294, %v168
        %v296 = vpop.permute.xlu0 %295
        %299 = vset.pattern.permute.xlu0 0
        %300 = vperm.xlu0 %299, %v169
        %v301 = vpop.permute.xlu0 %300
        %304 = vset.pattern.permute.xlu0 0
        %305 = vperm.xlu0 %304, %v170
        %v306 = vpop.permute.xlu0 %305
        %309 = vset.pattern.permute.xlu0 0
        %310 = vperm.xlu0 %309, %v171
        %v311 = vpop.permute.xlu0 %310
        %314 = vset.pattern.permute.xlu0 0
        %315 = vperm.xlu0 %314, %v172
        %v316 = vpop.permute.xlu0 %315
        %319 = vset.pattern.permute.xlu0 0
        %320 = vperm.xlu0 %319, %v173
        %v321 = vpop.permute.xlu0 %320
        %324 = vset.pattern.permute.xlu0 0
        %325 = vperm.xlu0 %324, %v174
        %v326 = vpop.permute.xlu0 %325
        %329 = vset.pattern.permute.xlu0 0
        %330 = vperm.xlu0 %329, %v175
        %v331 = vpop.permute.xlu0 %330
        %334 = vset.pattern.permute.xlu0 0
        %335 = vperm.xlu0 %334, %v176
        %v336 = vpop.permute.xlu0 %335
        %v338 = vlaneseq
        %v339 = vshrl.u32 %v338, 7
        %v340 = vsub.s32 0, %v339
        %v341 = vrot.slane %v177, %v340
        %v342 = vmul.f32 %v181, %v341
        %v343 = vmul.f32 %v186, %v341
        %v344 = vmul.f32 %v191, %v341
        %v345 = vmul.f32 %v196, %v341
        %v346 = vmul.f32 %v201, %v341
        %v347 = vmul.f32 %v206, %v341
        %v348 = vmul.f32 %v211, %v341
        %v349 = vmul.f32 %v216, %v341
        %v350 = vmul.f32 %v221, %v341
        %v351 = vmul.f32 %v226, %v341
        %v352 = vmul.f32 %v231, %v341
        %v353 = vmul.f32 %v236, %v341
        %v354 = vmul.f32 %v241, %v341
        %v355 = vmul.f32 %v246, %v341
        %v356 = vmul.f32 %v251, %v341
        %v357 = vmul.f32 %v256, %v341
        %v358 = vmul.f32 %v261, %v341
        %v359 = vmul.f32 %v266, %v341
        %v360 = vmul.f32 %v271, %v341
        %v361 = vmul.f32 %v276, %v341
        %v362 = vmul.f32 %v281, %v341
        %v363 = vmul.f32 %v286, %v341
        %v364 = vmul.f32 %v291, %v341
        %v365 = vmul.f32 %v296, %v341
        %v366 = vmul.f32 %v301, %v341
        %v367 = vmul.f32 %v306, %v341
        %v368 = vmul.f32 %v311, %v341
        %v369 = vmul.f32 %v316, %v341
        %v370 = vmul.f32 %v321, %v341
        %v371 = vmul.f32 %v326, %v341
        %v372 = vmul.f32 %v331, %v341
        %v373 = vmul.f32 %v336, %v341
        %374 = vset.pattern.permute.xlu0 1
        %375 = vperm.xlu0 %374, %v145
        %v376 = vpop.permute.xlu0 %375
        %378 = vset.pattern.permute.xlu0 1
        %379 = vperm.xlu0 %378, %v146
        %v380 = vpop.permute.xlu0 %379
        %382 = vset.pattern.permute.xlu0 1
        %383 = vperm.xlu0 %382, %v147
        %v384 = vpop.permute.xlu0 %383
        %386 = vset.pattern.permute.xlu0 1
        %387 = vperm.xlu0 %386, %v148
        %v388 = vpop.permute.xlu0 %387
        %390 = vset.pattern.permute.xlu0 1
        %391 = vperm.xlu0 %390, %v149
        %v392 = vpop.permute.xlu0 %391
        %394 = vset.pattern.permute.xlu0 1
        %395 = vperm.xlu0 %394, %v150
        %v396 = vpop.permute.xlu0 %395
        %398 = vset.pattern.permute.xlu0 1
        %399 = vperm.xlu0 %398, %v151
        %v400 = vpop.permute.xlu0 %399
        %402 = vset.pattern.permute.xlu0 1
        %403 = vperm.xlu0 %402, %v152
        %v404 = vpop.permute.xlu0 %403
        %406 = vset.pattern.permute.xlu0 1
        %407 = vperm.xlu0 %406, %v153
        %v408 = vpop.permute.xlu0 %407
        %410 = vset.pattern.permute.xlu0 1
        %411 = vperm.xlu0 %410, %v154
        %v412 = vpop.permute.xlu0 %411
        %414 = vset.pattern.permute.xlu0 1
        %415 = vperm.xlu0 %414, %v155
        %v416 = vpop.permute.xlu0 %415
        %418 = vset.pattern.permute.xlu0 1
        %419 = vperm.xlu0 %418, %v156
        %v420 = vpop.permute.xlu0 %419
        %422 = vset.pattern.permute.xlu0 1
        %423 = vperm.xlu0 %422, %v157
        %v424 = vpop.permute.xlu0 %423
        %426 = vset.pattern.permute.xlu0 1
        %427 = vperm.xlu0 %426, %v158
        %v428 = vpop.permute.xlu0 %427
        %430 = vset.pattern.permute.xlu0 1
        %431 = vperm.xlu0 %430, %v159
        %v432 = vpop.permute.xlu0 %431
        %434 = vset.pattern.permute.xlu0 1
        %435 = vperm.xlu0 %434, %v160
        %v436 = vpop.permute.xlu0 %435
        %438 = vset.pattern.permute.xlu0 1
        %439 = vperm.xlu0 %438, %v161
        %v440 = vpop.permute.xlu0 %439
        %442 = vset.pattern.permute.xlu0 1
        %443 = vperm.xlu0 %442, %v162
        %v444 = vpop.permute.xlu0 %443
        %446 = vset.pattern.permute.xlu0 1
        %447 = vperm.xlu0 %446, %v163
        %v448 = vpop.permute.xlu0 %447
        %450 = vset.pattern.permute.xlu0 1
        %451 = vperm.xlu0 %450, %v164
        %v452 = vpop.permute.xlu0 %451
        %454 = vset.pattern.permute.xlu0 1
        %455 = vperm.xlu0 %454, %v165
        %v456 = vpop.permute.xlu0 %455
        %458 = vset.pattern.permute.xlu0 1
        %459 = vperm.xlu0 %458, %v166
        %v460 = vpop.permute.xlu0 %459
        %462 = vset.pattern.permute.xlu0 1
        %463 = vperm.xlu0 %462, %v167
        %v464 = vpop.permute.xlu0 %463
        %466 = vset.pattern.permute.xlu0 1
        %467 = vperm.xlu0 %466, %v168
        %v468 = vpop.permute.xlu0 %467
        %470 = vset.pattern.permute.xlu0 1
        %471 = vperm.xlu0 %470, %v169
        %v472 = vpop.permute.xlu0 %471
        %474 = vset.pattern.permute.xlu0 1
        %475 = vperm.xlu0 %474, %v170
        %v476 = vpop.permute.xlu0 %475
        %478 = vset.pattern.permute.xlu0 1
        %479 = vperm.xlu0 %478, %v171
        %v480 = vpop.permute.xlu0 %479
        %482 = vset.pattern.permute.xlu0 1
        %483 = vperm.xlu0 %482, %v172
        %v484 = vpop.permute.xlu0 %483
        %486 = vset.pattern.permute.xlu0 1
        %487 = vperm.xlu0 %486, %v173
        %v488 = vpop.permute.xlu0 %487
        %490 = vset.pattern.permute.xlu0 1
        %491 = vperm.xlu0 %490, %v174
        %v492 = vpop.permute.xlu0 %491
        %494 = vset.pattern.permute.xlu0 1
        %495 = vperm.xlu0 %494, %v175
        %v496 = vpop.permute.xlu0 %495
        %498 = vset.pattern.permute.xlu0 1
        %499 = vperm.xlu0 %498, %v176
        %v500 = vpop.permute.xlu0 %499
        %v502 = vlaneseq
        %v503 = vshrl.u32 %v502, 7
        %v504 = vsub.s32 1, %v503
        %v505 = vrot.slane %v177, %v504
        %v506 = vmul.f32 %v376, %v505
        %v507 = vmul.f32 %v380, %v505
        %v508 = vmul.f32 %v384, %v505
        %v509 = vmul.f32 %v388, %v505
        %v510 = vmul.f32 %v392, %v505
        %v511 = vmul.f32 %v396, %v505
        %v512 = vmul.f32 %v400, %v505
        %v513 = vmul.f32 %v404, %v505
        %v514 = vmul.f32 %v408, %v505
        %v515 = vmul.f32 %v412, %v505
        %v516 = vmul.f32 %v416, %v505
        %v517 = vmul.f32 %v420, %v505
        %v518 = vmul.f32 %v424, %v505
        %v519 = vmul.f32 %v428, %v505
        %v520 = vmul.f32 %v432, %v505
        %v521 = vmul.f32 %v436, %v505
        %v522 = vmul.f32 %v440, %v505
        %v523 = vmul.f32 %v444, %v505
        %v524 = vmul.f32 %v448, %v505
        %v525 = vmul.f32 %v452, %v505
        %v526 = vmul.f32 %v456, %v505
        %v527 = vmul.f32 %v460, %v505
        %v528 = vmul.f32 %v464, %v505
        %v529 = vmul.f32 %v468, %v505
        %v530 = vmul.f32 %v472, %v505
        %v531 = vmul.f32 %v476, %v505
        %v532 = vmul.f32 %v480, %v505
        %v533 = vmul.f32 %v484, %v505
        %v534 = vmul.f32 %v488, %v505
        %v535 = vmul.f32 %v492, %v505
        %v536 = vmul.f32 %v496, %v505
        %v537 = vmul.f32 %v500, %v505
        %v538 = vadd.f32 %v342, %v506
        %v539 = vadd.f32 %v343, %v507
        %v540 = vadd.f32 %v344, %v508
        %v541 = vadd.f32 %v345, %v509
        %v542 = vadd.f32 %v346, %v510
        %v543 = vadd.f32 %v347, %v511
        %v544 = vadd.f32 %v348, %v512
        %v545 = vadd.f32 %v349, %v513
        %v546 = vadd.f32 %v350, %v514
        %v547 = vadd.f32 %v351, %v515
        %v548 = vadd.f32 %v352, %v516
        %v549 = vadd.f32 %v353, %v517
        %v550 = vadd.f32 %v354, %v518
        %v551 = vadd.f32 %v355, %v519
        %v552 = vadd.f32 %v356, %v520
        %v553 = vadd.f32 %v357, %v521
        %v554 = vadd.f32 %v358, %v522
        %v555 = vadd.f32 %v359, %v523
        %v556 = vadd.f32 %v360, %v524
        %v557 = vadd.f32 %v361, %v525
        %v558 = vadd.f32 %v362, %v526
        %v559 = vadd.f32 %v363, %v527
        %v560 = vadd.f32 %v364, %v528
        %v561 = vadd.f32 %v365, %v529
        %v562 = vadd.f32 %v366, %v530
        %v563 = vadd.f32 %v367, %v531
        %v564 = vadd.f32 %v368, %v532
        %v565 = vadd.f32 %v369, %v533
        %v566 = vadd.f32 %v370, %v534
        %v567 = vadd.f32 %v371, %v535
        %v568 = vadd.f32 %v372, %v536
        %v569 = vadd.f32 %v373, %v537
        %570 = vset.pattern.permute.xlu0 2
        %571 = vperm.xlu0 %570, %v145
        %v572 = vpop.permute.xlu0 %571
        %574 = vset.pattern.permute.xlu0 2
        %575 = vperm.xlu0 %574, %v146
        %v576 = vpop.permute.xlu0 %575
        %578 = vset.pattern.permute.xlu0 2
        %579 = vperm.xlu0 %578, %v147
        %v580 = vpop.permute.xlu0 %579
        %582 = vset.pattern.permute.xlu0 2
        %583 = vperm.xlu0 %582, %v148
        %v584 = vpop.permute.xlu0 %583
        %586 = vset.pattern.permute.xlu0 2
        %587 = vperm.xlu0 %586, %v149
        %v588 = vpop.permute.xlu0 %587
        %590 = vset.pattern.permute.xlu0 2
        %591 = vperm.xlu0 %590, %v150
        %v592 = vpop.permute.xlu0 %591
        %594 = vset.pattern.permute.xlu0 2
        %595 = vperm.xlu0 %594, %v151
        %v596 = vpop.permute.xlu0 %595
        %598 = vset.pattern.permute.xlu0 2
        %599 = vperm.xlu0 %598, %v152
        %v600 = vpop.permute.xlu0 %599
        %602 = vset.pattern.permute.xlu0 2
        %603 = vperm.xlu0 %602, %v153
        %v604 = vpop.permute.xlu0 %603
        %606 = vset.pattern.permute.xlu0 2
        %607 = vperm.xlu0 %606, %v154
        %v608 = vpop.permute.xlu0 %607
        %610 = vset.pattern.permute.xlu0 2
        %611 = vperm.xlu0 %610, %v155
        %v612 = vpop.permute.xlu0 %611
        %614 = vset.pattern.permute.xlu0 2
        %615 = vperm.xlu0 %614, %v156
        %v616 = vpop.permute.xlu0 %615
        %618 = vset.pattern.permute.xlu0 2
        %619 = vperm.xlu0 %618, %v157
        %v620 = vpop.permute.xlu0 %619
        %622 = vset.pattern.permute.xlu0 2
        %623 = vperm.xlu0 %622, %v158
        %v624 = vpop.permute.xlu0 %623
        %626 = vset.pattern.permute.xlu0 2
        %627 = vperm.xlu0 %626, %v159
        %v628 = vpop.permute.xlu0 %627
        %630 = vset.pattern.permute.xlu0 2
        %631 = vperm.xlu0 %630, %v160
        %v632 = vpop.permute.xlu0 %631
        %634 = vset.pattern.permute.xlu0 2
        %635 = vperm.xlu0 %634, %v161
        %v636 = vpop.permute.xlu0 %635
        %638 = vset.pattern.permute.xlu0 2
        %639 = vperm.xlu0 %638, %v162
        %v640 = vpop.permute.xlu0 %639
        %642 = vset.pattern.permute.xlu0 2
        %643 = vperm.xlu0 %642, %v163
        %v644 = vpop.permute.xlu0 %643
        %646 = vset.pattern.permute.xlu0 2
        %647 = vperm.xlu0 %646, %v164
        %v648 = vpop.permute.xlu0 %647
        %650 = vset.pattern.permute.xlu0 2
        %651 = vperm.xlu0 %650, %v165
        %v652 = vpop.permute.xlu0 %651
        %654 = vset.pattern.permute.xlu0 2
        %655 = vperm.xlu0 %654, %v166
        %v656 = vpop.permute.xlu0 %655
        %658 = vset.pattern.permute.xlu0 2
        %659 = vperm.xlu0 %658, %v167
        %v660 = vpop.permute.xlu0 %659
        %662 = vset.pattern.permute.xlu0 2
        %663 = vperm.xlu0 %662, %v168
        %v664 = vpop.permute.xlu0 %663
        %666 = vset.pattern.permute.xlu0 2
        %667 = vperm.xlu0 %666, %v169
        %v668 = vpop.permute.xlu0 %667
        %670 = vset.pattern.permute.xlu0 2
        %671 = vperm.xlu0 %670, %v170
        %v672 = vpop.permute.xlu0 %671
        %674 = vset.pattern.permute.xlu0 2
        %675 = vperm.xlu0 %674, %v171
        %v676 = vpop.permute.xlu0 %675
        %678 = vset.pattern.permute.xlu0 2
        %679 = vperm.xlu0 %678, %v172
        %v680 = vpop.permute.xlu0 %679
        %682 = vset.pattern.permute.xlu0 2
        %683 = vperm.xlu0 %682, %v173
        %v684 = vpop.permute.xlu0 %683
        %686 = vset.pattern.permute.xlu0 2
        %687 = vperm.xlu0 %686, %v174
        %v688 = vpop.permute.xlu0 %687
        %690 = vset.pattern.permute.xlu0 2
        %691 = vperm.xlu0 %690, %v175
        %v692 = vpop.permute.xlu0 %691
        %694 = vset.pattern.permute.xlu0 2
        %695 = vperm.xlu0 %694, %v176
        %v696 = vpop.permute.xlu0 %695
        %v698 = vlaneseq
        %v699 = vshrl.u32 %v698, 7
        %v700 = vsub.s32 2, %v699
        %v701 = vrot.slane %v177, %v700
        %v702 = vmul.f32 %v572, %v701
        %v703 = vmul.f32 %v576, %v701
        %v704 = vmul.f32 %v580, %v701
        %v705 = vmul.f32 %v584, %v701
        %v706 = vmul.f32 %v588, %v701
        %v707 = vmul.f32 %v592, %v701
        %v708 = vmul.f32 %v596, %v701
        %v709 = vmul.f32 %v600, %v701
        %v710 = vmul.f32 %v604, %v701
        %v711 = vmul.f32 %v608, %v701
        %v712 = vmul.f32 %v612, %v701
        %v713 = vmul.f32 %v616, %v701
        %v714 = vmul.f32 %v620, %v701
        %v715 = vmul.f32 %v624, %v701
        %v716 = vmul.f32 %v628, %v701
        %v717 = vmul.f32 %v632, %v701
        %v718 = vmul.f32 %v636, %v701
        %v719 = vmul.f32 %v640, %v701
        %v720 = vmul.f32 %v644, %v701
        %v721 = vmul.f32 %v648, %v701
        %v722 = vmul.f32 %v652, %v701
        %v723 = vmul.f32 %v656, %v701
        %v724 = vmul.f32 %v660, %v701
        %v725 = vmul.f32 %v664, %v701
        %v726 = vmul.f32 %v668, %v701
        %v727 = vmul.f32 %v672, %v701
        %v728 = vmul.f32 %v676, %v701
        %v729 = vmul.f32 %v680, %v701
        %v730 = vmul.f32 %v684, %v701
        %v731 = vmul.f32 %v688, %v701
        %v732 = vmul.f32 %v692, %v701
        %v733 = vmul.f32 %v696, %v701
        %v734 = vadd.f32 %v538, %v702
        %v735 = vadd.f32 %v539, %v703
        %v736 = vadd.f32 %v540, %v704
        %v737 = vadd.f32 %v541, %v705
        %v738 = vadd.f32 %v542, %v706
        %v739 = vadd.f32 %v543, %v707
        %v740 = vadd.f32 %v544, %v708
        %v741 = vadd.f32 %v545, %v709
        %v742 = vadd.f32 %v546, %v710
        %v743 = vadd.f32 %v547, %v711
        %v744 = vadd.f32 %v548, %v712
        %v745 = vadd.f32 %v549, %v713
        %v746 = vadd.f32 %v550, %v714
        %v747 = vadd.f32 %v551, %v715
        %v748 = vadd.f32 %v552, %v716
        %v749 = vadd.f32 %v553, %v717
        %v750 = vadd.f32 %v554, %v718
        %v751 = vadd.f32 %v555, %v719
        %v752 = vadd.f32 %v556, %v720
        %v753 = vadd.f32 %v557, %v721
        %v754 = vadd.f32 %v558, %v722
        %v755 = vadd.f32 %v559, %v723
        %v756 = vadd.f32 %v560, %v724
        %v757 = vadd.f32 %v561, %v725
        %v758 = vadd.f32 %v562, %v726
        %v759 = vadd.f32 %v563, %v727
        %v760 = vadd.f32 %v564, %v728
        %v761 = vadd.f32 %v565, %v729
        %v762 = vadd.f32 %v566, %v730
        %v763 = vadd.f32 %v567, %v731
        %v764 = vadd.f32 %v568, %v732
        %v765 = vadd.f32 %v569, %v733
        %766 = vset.pattern.permute.xlu0 3
        %767 = vperm.xlu0 %766, %v145
        %v768 = vpop.permute.xlu0 %767
        %770 = vset.pattern.permute.xlu0 3
        %771 = vperm.xlu0 %770, %v146
        %v772 = vpop.permute.xlu0 %771
        %774 = vset.pattern.permute.xlu0 3
        %775 = vperm.xlu0 %774, %v147
        %v776 = vpop.permute.xlu0 %775
        %778 = vset.pattern.permute.xlu0 3
        %779 = vperm.xlu0 %778, %v148
        %v780 = vpop.permute.xlu0 %779
        %782 = vset.pattern.permute.xlu0 3
        %783 = vperm.xlu0 %782, %v149
        %v784 = vpop.permute.xlu0 %783
        %786 = vset.pattern.permute.xlu0 3
        %787 = vperm.xlu0 %786, %v150
        %v788 = vpop.permute.xlu0 %787
        %790 = vset.pattern.permute.xlu0 3
        %791 = vperm.xlu0 %790, %v151
        %v792 = vpop.permute.xlu0 %791
        %794 = vset.pattern.permute.xlu0 3
        %795 = vperm.xlu0 %794, %v152
        %v796 = vpop.permute.xlu0 %795
        %798 = vset.pattern.permute.xlu0 3
        %799 = vperm.xlu0 %798, %v153
        %v800 = vpop.permute.xlu0 %799
        %802 = vset.pattern.permute.xlu0 3
        %803 = vperm.xlu0 %802, %v154
        %v804 = vpop.permute.xlu0 %803
        %806 = vset.pattern.permute.xlu0 3
        %807 = vperm.xlu0 %806, %v155
        %v808 = vpop.permute.xlu0 %807
        %810 = vset.pattern.permute.xlu0 3
        %811 = vperm.xlu0 %810, %v156
        %v812 = vpop.permute.xlu0 %811
        %814 = vset.pattern.permute.xlu0 3
        %815 = vperm.xlu0 %814, %v157
        %v816 = vpop.permute.xlu0 %815
        %818 = vset.pattern.permute.xlu0 3
        %819 = vperm.xlu0 %818, %v158
        %v820 = vpop.permute.xlu0 %819
        %822 = vset.pattern.permute.xlu0 3
        %823 = vperm.xlu0 %822, %v159
        %v824 = vpop.permute.xlu0 %823
        %826 = vset.pattern.permute.xlu0 3
        %827 = vperm.xlu0 %826, %v160
        %v828 = vpop.permute.xlu0 %827
        %830 = vset.pattern.permute.xlu0 3
        %831 = vperm.xlu0 %830, %v161
        %v832 = vpop.permute.xlu0 %831
        %834 = vset.pattern.permute.xlu0 3
        %835 = vperm.xlu0 %834, %v162
        %v836 = vpop.permute.xlu0 %835
        %838 = vset.pattern.permute.xlu0 3
        %839 = vperm.xlu0 %838, %v163
        %v840 = vpop.permute.xlu0 %839
        %842 = vset.pattern.permute.xlu0 3
        %843 = vperm.xlu0 %842, %v164
        %v844 = vpop.permute.xlu0 %843
        %846 = vset.pattern.permute.xlu0 3
        %847 = vperm.xlu0 %846, %v165
        %v848 = vpop.permute.xlu0 %847
        %850 = vset.pattern.permute.xlu0 3
        %851 = vperm.xlu0 %850, %v166
        %v852 = vpop.permute.xlu0 %851
        %854 = vset.pattern.permute.xlu0 3
        %855 = vperm.xlu0 %854, %v167
        %v856 = vpop.permute.xlu0 %855
        %858 = vset.pattern.permute.xlu0 3
        %859 = vperm.xlu0 %858, %v168
        %v860 = vpop.permute.xlu0 %859
        %862 = vset.pattern.permute.xlu0 3
        %863 = vperm.xlu0 %862, %v169
        %v864 = vpop.permute.xlu0 %863
        %866 = vset.pattern.permute.xlu0 3
        %867 = vperm.xlu0 %866, %v170
        %v868 = vpop.permute.xlu0 %867
        %870 = vset.pattern.permute.xlu0 3
        %871 = vperm.xlu0 %870, %v171
        %v872 = vpop.permute.xlu0 %871
        %874 = vset.pattern.permute.xlu0 3
        %875 = vperm.xlu0 %874, %v172
        %v876 = vpop.permute.xlu0 %875
        %878 = vset.pattern.permute.xlu0 3
        %879 = vperm.xlu0 %878, %v173
        %v880 = vpop.permute.xlu0 %879
        %882 = vset.pattern.permute.xlu0 3
        %883 = vperm.xlu0 %882, %v174
        %v884 = vpop.permute.xlu0 %883
        %886 = vset.pattern.permute.xlu0 3
        %887 = vperm.xlu0 %886, %v175
        %v888 = vpop.permute.xlu0 %887
        %890 = vset.pattern.permute.xlu0 3
        %891 = vperm.xlu0 %890, %v176
        %v892 = vpop.permute.xlu0 %891
        %v894 = vlaneseq
        %v895 = vshrl.u32 %v894, 7
        %v896 = vsub.s32 3, %v895
        %v897 = vrot.slane %v177, %v896
        %v898 = vmul.f32 %v768, %v897
        %v899 = vmul.f32 %v772, %v897
        %v900 = vmul.f32 %v776, %v897
        %v901 = vmul.f32 %v780, %v897
        %v902 = vmul.f32 %v784, %v897
        %v903 = vmul.f32 %v788, %v897
        %v904 = vmul.f32 %v792, %v897
        %v905 = vmul.f32 %v796, %v897
        %v906 = vmul.f32 %v800, %v897
        %v907 = vmul.f32 %v804, %v897
        %v908 = vmul.f32 %v808, %v897
        %v909 = vmul.f32 %v812, %v897
        %v910 = vmul.f32 %v816, %v897
        %v911 = vmul.f32 %v820, %v897
        %v912 = vmul.f32 %v824, %v897
        %v913 = vmul.f32 %v828, %v897
        %v914 = vmul.f32 %v832, %v897
        %v915 = vmul.f32 %v836, %v897
        %v916 = vmul.f32 %v840, %v897
        %v917 = vmul.f32 %v844, %v897
        %v918 = vmul.f32 %v848, %v897
        %v919 = vmul.f32 %v852, %v897
        %v920 = vmul.f32 %v856, %v897
        %v921 = vmul.f32 %v860, %v897
        %v922 = vmul.f32 %v864, %v897
        %v923 = vmul.f32 %v868, %v897
        %v924 = vmul.f32 %v872, %v897
        %v925 = vmul.f32 %v876, %v897
        %v926 = vmul.f32 %v880, %v897
        %v927 = vmul.f32 %v884, %v897
        %v928 = vmul.f32 %v888, %v897
        %v929 = vmul.f32 %v892, %v897
        %v930 = vadd.f32 %v734, %v898
        %v931 = vadd.f32 %v735, %v899
        %v932 = vadd.f32 %v736, %v900
        %v933 = vadd.f32 %v737, %v901
        %v934 = vadd.f32 %v738, %v902
        %v935 = vadd.f32 %v739, %v903
        %v936 = vadd.f32 %v740, %v904
        %v937 = vadd.f32 %v741, %v905
        %v938 = vadd.f32 %v742, %v906
        %v939 = vadd.f32 %v743, %v907
        %v940 = vadd.f32 %v744, %v908
        %v941 = vadd.f32 %v745, %v909
        %v942 = vadd.f32 %v746, %v910
        %v943 = vadd.f32 %v747, %v911
        %v944 = vadd.f32 %v748, %v912
        %v945 = vadd.f32 %v749, %v913
        %v946 = vadd.f32 %v750, %v914
        %v947 = vadd.f32 %v751, %v915
        %v948 = vadd.f32 %v752, %v916
        %v949 = vadd.f32 %v753, %v917
        %v950 = vadd.f32 %v754, %v918
        %v951 = vadd.f32 %v755, %v919
        %v952 = vadd.f32 %v756, %v920
        %v953 = vadd.f32 %v757, %v921
        %v954 = vadd.f32 %v758, %v922
        %v955 = vadd.f32 %v759, %v923
        %v956 = vadd.f32 %v760, %v924
        %v957 = vadd.f32 %v761, %v925
        %v958 = vadd.f32 %v762, %v926
        %v959 = vadd.f32 %v763, %v927
        %v960 = vadd.f32 %v764, %v928
        %v961 = vadd.f32 %v765, %v929
        %962 = vst [vmem:[%s137] sm:$0xff] %v930
        %963 = vst [vmem:[%s137 + $0x8] sm:$0xff] %v931
        %964 = vst [vmem:[%s137 + $0x10] sm:$0xff] %v932
        %965 = vst [vmem:[%s137 + $0x18] sm:$0xff] %v933
        %966 = vst [vmem:[%s137 + $0x20] sm:$0xff] %v934
        %967 = vst [vmem:[%s137 + $0x28] sm:$0xff] %v935
        %968 = vst [vmem:[%s137 + $0x30] sm:$0xff] %v936
        %969 = vst [vmem:[%s137 + $0x38] sm:$0xff] %v937
        %970 = vst [vmem:[%s137 + $0x40] sm:$0xff] %v938
        %971 = vst [vmem:[%s137 + $0x48] sm:$0xff] %v939
        %972 = vst [vmem:[%s137 + $0x50] sm:$0xff] %v940
        %973 = vst [vmem:[%s137 + $0x58] sm:$0xff] %v941
        %974 = vst [vmem:[%s137 + $0x60] sm:$0xff] %v942
        %975 = vst [vmem:[%s137 + $0x68] sm:$0xff] %v943
        %976 = vst [vmem:[%s137 + $0x70] sm:$0xff] %v944
        %977 = vst [vmem:[%s137 + $0x78] sm:$0xff] %v945
        %978 = vst [vmem:[%s137 + $0x80] sm:$0xff] %v946
        %979 = vst [vmem:[%s137 + $0x88] sm:$0xff] %v947
        %980 = vst [vmem:[%s137 + $0x90] sm:$0xff] %v948
        %981 = vst [vmem:[%s137 + $0x98] sm:$0xff] %v949
        %982 = vst [vmem:[%s137 + $0xa0] sm:$0xff] %v950
        %983 = vst [vmem:[%s137 + $0xa8] sm:$0xff] %v951
        %984 = vst [vmem:[%s137 + $0xb0] sm:$0xff] %v952
        %985 = vst [vmem:[%s137 + $0xb8] sm:$0xff] %v953
        %986 = vst [vmem:[%s137 + $0xc0] sm:$0xff] %v954
        %987 = vst [vmem:[%s137 + $0xc8] sm:$0xff] %v955
        %988 = vst [vmem:[%s137 + $0xd0] sm:$0xff] %v956
        %989 = vst [vmem:[%s137 + $0xd8] sm:$0xff] %v957
        %990 = vst [vmem:[%s137 + $0xe0] sm:$0xff] %v958
        %991 = vst [vmem:[%s137 + $0xe8] sm:$0xff] %v959
        %992 = vst [vmem:[%s137 + $0xf0] sm:$0xff] %v960
        %993 = vst [vmem:[%s137 + $0xf8] sm:$0xff] %v961
        %s994 = sand.u32 %s71, 1
        %s995 = scalar_lea.sflag [#allocation3], %s994
        %s996 = sand.u32 %s71, 1
        %s997 = smul.addr %s996, 256
        %s998 = scalar_lea.vmem [#allocation2], %s997
        // Predicated region
        $region29: #{tpu_custom_call.1} parent=27 // pred_check
          %p999 = pneg %p81
        $region30: #{tpu_custom_call.1} parent=27 // pred_check_branch
          %1001 = sbr.rel (%p999) target = $region32
        $region31: #{tpu_custom_call.1} parent=27 // pred_region
          %s1002 = smul.u32 32, %s16
          %s1004 = ssub.s32 4096, 4096
          %1005 = vsyncadd %s995, %s1004
          %s1006 = smul.addr %s1002, 128
          %s1007 = scalar_lea.hbm %s2, %s1006
          %s1008 = sshll.u32 %s998, 4
          %s1009 = int_to_ptr.vmem [resolvable:$true] %s1008
          %1014 = dma.vmem_to_hbm [thread:$0]  %s1009, 4096, %s1007, %s995, 128, 128, 8
        $region32: #{tpu_custom_call.1} parent=27 // pred_fallthru
          _
      $region28: #{tpu_custom_call.1} parent=5 // pred_fallthru
        _
      %p1015 = scmp.le.s32.totalorder 2, %s11
      // Predicated region
      $region33: #{tpu_custom_call.1} parent=5 // pred_check
        %p1016 = pneg %p1015
      $region34: #{tpu_custom_call.1} parent=5 // pred_check_branch
        %1018 = sbr.rel (%p1016) target = $region36
      $region35: #{tpu_custom_call.1} parent=5 // pred_region
        %s1019 = ssub.s32 %s11, 2
        // Predicated region
        $region37: #{tpu_custom_call.1} parent=35 // pred_check
          %p1020 = pneg %p87
        $region38: #{tpu_custom_call.1} parent=35 // pred_check_branch
          %1022 = sbr.rel (%p1020) target = $region40
        $region39: #{tpu_custom_call.1} parent=35 // pred_region
          %s1023 = sand.u32 %s72, 1
          %s1024 = scalar_lea.sflag [#allocation3], %s1023
          %s1025 = sand.u32 %s72, 1
          %s1026 = smul.addr %s1025, 256
          %s1027 = scalar_lea.vmem [#allocation2], %s1026
          %1028 = dma.done %s1024, 4096
        $region40: #{tpu_custom_call.1} parent=35 // pred_fallthru
          _
      $region36: #{tpu_custom_call.1} parent=5 // pred_fallthru
        _
    $region6: #{tpu_custom_call.1} parent=1 // loop_footer
      %s15 = sadd.s32 1, %s11
    $region7: #{tpu_custom_call.1} parent=1 // loop_footer_branch
      %10 = sbr.rel target = $region3
    $region8: #{tpu_custom_call.1} parent=1 // loop_exit
      _
    %1029 = vsyncpa [#allocation3], 1
    %s1030 = scalar_lea.sflag [#allocation3], 1
    %1031 = vsyncpa %s1030, 1

</llo_original>
